<compile_context>
chip_gen: v7x
topology: tpu7x:2x2x1
jax: 0.10.0
libtpu: 0.0.40
codegen_flags: <defaults>
</compile_context>

<pallas_src>
import functools
import math

import jax
import jax.numpy as jnp
from jax.experimental import pallas as pl
from jax.experimental.pallas import tpu as pltpu


def _round_up(x, m):
    return (x + m - 1) // m * m


def _value_kernel(s_ref,
                  w1_ref, b1_ref, w2_ref, b2_ref,
                  wh1_ref, bh1_ref, wh2_ref, bh2_ref,
                  wh3_ref, bh3_ref,
                  out_ref):
    """ValueNetwork forward for one batch tile (TILE_B rows).

    bf16 MXU matmuls with f32 accumulation.  Bias/ReLU epilogues of the wide
    layers run in bf16 (packed VPU on v6e/v7x); the narrow 32-wide layer stays
    f32.  The Linear(32,1) head is a (1,32)@(32,TILE_B) product so the value
    vector is produced lane-dense in a (1, TILE_B) row (unmasked stores).
    """
    # states arrive as f32 straight from HBM; cast in-kernel (saves a wrapper
    # HBM read+write pass over the only large tensor).
    s = s_ref[...].astype(jnp.bfloat16)                                   # (TB,16)

    # conv trunk: Linear(16,256)+ReLU, Linear(256,256)+ReLU   (bf16 epilogues)
    h = jnp.dot(s, w1_ref[...], preferred_element_type=jnp.float32)
    h = jnp.maximum(h.astype(jnp.bfloat16) + b1_ref[...], 0.0)           # (TB,256) bf16
    h = jnp.dot(h, w2_ref[...], preferred_element_type=jnp.float32)
    h = jnp.maximum(h.astype(jnp.bfloat16) + b2_ref[...], 0.0)           # (TB,256) bf16

    # value_head: Linear(256,128)+ReLU (bf16 epilogue), Linear(128,32)+ReLU (f32, tiny)
    x = jnp.dot(h, wh1_ref[...], preferred_element_type=jnp.float32)
    x = jnp.maximum(x.astype(jnp.bfloat16) + bh1_ref[...], 0.0)          # (TB,128) bf16
    x = jnp.dot(x, wh2_ref[...], preferred_element_type=jnp.float32) + bh2_ref[...]
    x = jnp.maximum(x, 0.0)                                              # (TB,32) f32

    # Linear(32,1): computed transposed so the output is lane-dense (batch in
    # lanes) instead of an N=1 column with masked stores.  bf16 MXU dot.
    xt = x.T.astype(jnp.bfloat16)                                        # (32,TB)
    v_row = jnp.dot(wh3_ref[...], xt, preferred_element_type=jnp.float32)  # (1,TB)
    out_ref[...] = (v_row + bh3_ref[...]).astype(out_ref.dtype)


def _choose_tile_b(B, max_tile_b):
    """Batch tile: multiple of 128 (lane-dense output), as large as allowed,
    but >= 2 grid steps once B is big enough so both v7x TensorCores get work."""
    max_tile_b = max(128, (max_tile_b // 128) * 128)
    if B >= 512:
        tb = _round_up(pl.cdiv(B, 2), 128)   # at least 2 grid steps
    else:
        tb = _round_up(B, 128)
    return max(128, min(max_tile_b, tb))


def value_forward(states, p, max_tile_b=2048):
    """ValueNetwork.forward: states (B,16) f32 -> value (B,1) f32.

    `p` must come from prepare_value_params() (bf16 weights, wh3 pre-transposed)
    so no per-call casts/transposes are emitted.
    """
    B = states.shape[0]
    tile_b = _choose_tile_b(B, max_tile_b)
    grid = (pl.cdiv(B, tile_b),)
    out_cols = grid[0] * tile_b              # tile-aligned output slab; sliced to B below

    const = lambda i: (0, 0)                 # weights/biases stay VMEM-resident

    out = pl.pallas_call(
        _value_kernel,
        out_shape=jax.ShapeDtypeStruct((1, out_cols), jnp.float32),
        grid_spec=pltpu.PrefetchScalarGridSpec(
            num_scalar_prefetch=0,
            grid=grid,
            in_specs=[
                pl.BlockSpec((tile_b, 16), lambda i: (i, 0)),   # f32 states tile (ragged last block OK: rows independent)
                pl.BlockSpec((16, 256), const),  pl.BlockSpec((1, 256), const),
                pl.BlockSpec((256, 256), const), pl.BlockSpec((1, 256), const),
                pl.BlockSpec((256, 128), const), pl.BlockSpec((1, 128), const),
                pl.BlockSpec((128, 32), const),  pl.BlockSpec((1, 32), const),
                pl.BlockSpec((1, 32), const),                   # wh3 row (bf16)
                pl.BlockSpec((1, 1), const),                    # bh3 (f32)
            ],
            out_specs=pl.BlockSpec((1, tile_b), lambda i: (0, i)),  # lane-dense values
        ),
        compiler_params=pltpu.CompilerParams(
            dimension_semantics=("parallel",),          # shard batch tiles over TCs (v7x)
            vmem_limit_bytes=48 * 1024 * 1024,          # fits TB=2048 working set; <=~48MB per-TC on v7x
        ),
    )(states, p["w1"], p["b1"], p["w2"], p["b2"],
      p["wh1"], p["bh1"], p["wh2"], p["bh2"], p["wh3"], p["bh3"])

    return out[0, :B].reshape(B, 1)


def make_value_params(key):
    """He-uniform weights (as in initialize_weights_he), torch-style uniform biases.

    Stored f32, transposed as (in_features, out_features) so x @ W + b.  Used
    directly by the f32 reference; run prepare_value_params() for the kernel.
    """
    ks = jax.random.split(key, 10)

    def he_w(k, out_f, in_f):
        bound = math.sqrt(6.0 / in_f)
        return jax.random.uniform(k, (in_f, out_f), jnp.float32, -bound, bound)

    def bias(k, in_f, n):
        bound = 1.0 / math.sqrt(in_f)
        return jax.random.uniform(k, (1, n), jnp.float32, -bound, bound)

    return dict(
        w1=he_w(ks[0], 256, 16),   b1=bias(ks[1], 16, 256),
        w2=he_w(ks[2], 256, 256),  b2=bias(ks[3], 256, 256),
        wh1=he_w(ks[4], 128, 256), bh1=bias(ks[5], 256, 128),
        wh2=he_w(ks[6], 32, 128),  bh2=bias(ks[7], 128, 32),
        wh3=he_w(ks[8], 1, 32),    bh3=bias(ks[9], 32, 1),
    )


def prepare_value_params(params):
    """One-time (outside jit) cast/layout into the dtypes the kernel consumes."""
    return dict(
        w1=params["w1"].astype(jnp.bfloat16),
        b1=params["b1"].astype(jnp.bfloat16),
        w2=params["w2"].astype(jnp.bfloat16),
        b2=params["b2"].astype(jnp.bfloat16),
        wh1=params["wh1"].astype(jnp.bfloat16),
        bh1=params["bh1"].astype(jnp.bfloat16),
        wh2=params["wh2"].astype(jnp.bfloat16),
        bh2=params["bh2"],                                  # f32 (1,32)
        wh3=params["wh3"].T.astype(jnp.bfloat16),           # (1,32) bf16 row for the head
        bh3=params["bh3"],                                  # f32 (1,1)
    )


def _reference_forward(states, p):
    """Plain-JAX f32 reference for correctness checking."""
    relu = lambda x: jnp.maximum(x, 0.0)
    h = relu(states @ p["w1"] + p["b1"])
    h = relu(h @ p["w2"] + p["b2"])
    x = relu(h @ p["wh1"] + p["bh1"])
    x = relu(x @ p["wh2"] + p["bh2"])
    return x @ p["wh3"] + p["bh3"]


if __name__ == "__main__":
    key = jax.random.PRNGKey(0)
    k_s, k_p, k_s2 = jax.random.split(key, 3)

    params = make_value_params(k_p)          # f32 params for the reference
    kparams = prepare_value_params(params)   # bf16 / pre-transposed, once, outside jit

    fwd = jax.jit(functools.partial(value_forward, max_tile_b=2048))

    # small demo shape (single grid step, states block bigger than B -> padded block)
    B = 2
    states = jax.random.normal(k_s, (B, 16), jnp.float32)
    v = fwd(states, kparams)
    jax.block_until_ready(v)
    ref = _reference_forward(states, params)
    assert v.shape == (B, 1)
    assert jnp.allclose(v, ref, atol=7.5e-2, rtol=7.5e-2)   # bf16 weights/activations vs f32 ref

    # multi-tile path: 2 grid steps (v7x megacore split) with a ragged last block
    B2 = 640
    states2 = jax.random.normal(k_s2, (B2, 16), jnp.float32)
    v2 = fwd(states2, kparams)
    jax.block_until_ready(v2)
    ref2 = _reference_forward(states2, params)
    assert v2.shape == (B2, 1)
    assert jnp.allclose(v2, ref2, atol=7.5e-2, rtol=7.5e-2)

    print("KERNEL_OK")
</pallas_src>

<mosaic_0001>
module attributes {stable_mosaic.version = 11 : i64} {
  func.func @_value_kernel(%arg0: i32, %arg1: memref<128x16xf32, #tpu.memory_space<vmem>>, %arg2: memref<16x256xbf16, #tpu.memory_space<vmem>>, %arg3: memref<1x256xbf16, #tpu.memory_space<vmem>>, %arg4: memref<256x256xbf16, #tpu.memory_space<vmem>>, %arg5: memref<1x256xbf16, #tpu.memory_space<vmem>>, %arg6: memref<256x128xbf16, #tpu.memory_space<vmem>>, %arg7: memref<1x128xbf16, #tpu.memory_space<vmem>>, %arg8: memref<128x32xbf16, #tpu.memory_space<vmem>>, %arg9: memref<1x32xf32, #tpu.memory_space<vmem>>, %arg10: memref<1x32xbf16, #tpu.memory_space<vmem>>, %arg11: memref<1x1xf32, #tpu.memory_space<vmem>>, %arg12: memref<1x128xf32, #tpu.memory_space<vmem>>) attributes {dimension_semantics = [#tpu.dimension_semantics<parallel>], iteration_bounds = array<i64: 1>, scalar_prefetch = 0 : i64, scratch_operands = 0 : i64, tpu.core_type = #tpu.core_type<tc>, window_params = [{transform_indices = @transform_0, window_bounds = array<i64: 128, 16>}, {pipeline_mode = #tpu.pipeline_mode<synchronous>, transform_indices = @transform_1, window_bounds = array<i64: 16, 256>}, {pipeline_mode = #tpu.pipeline_mode<synchronous>, transform_indices = @transform_2, window_bounds = array<i64: 1, 256>}, {pipeline_mode = #tpu.pipeline_mode<synchronous>, transform_indices = @transform_3, window_bounds = array<i64: 256, 256>}, {pipeline_mode = #tpu.pipeline_mode<synchronous>, transform_indices = @transform_4, window_bounds = array<i64: 1, 256>}, {pipeline_mode = #tpu.pipeline_mode<synchronous>, transform_indices = @transform_5, window_bounds = array<i64: 256, 128>}, {pipeline_mode = #tpu.pipeline_mode<synchronous>, transform_indices = @transform_6, window_bounds = array<i64: 1, 128>}, {pipeline_mode = #tpu.pipeline_mode<synchronous>, transform_indices = @transform_7, window_bounds = array<i64: 128, 32>}, {pipeline_mode = #tpu.pipeline_mode<synchronous>, transform_indices = @transform_8, window_bounds = array<i64: 1, 32>}, {pipeline_mode = #tpu.pipeline_mode<synchronous>, transform_indices = @transform_9, window_bounds = array<i64: 1, 32>}, {pipeline_mode = #tpu.pipeline_mode<synchronous>, transform_indices = @transform_10, window_bounds = array<i64: 1, 1>}, {transform_indices = @transform_11, window_bounds = array<i64: 1, 128>}]} {
    %c0 = arith.constant 0 : index
    %c0_0 = arith.constant 0 : index
    %0 = vector.load %arg1[%c0, %c0_0] : memref<128x16xf32, #tpu.memory_space<vmem>>, vector<128x16xf32>
    %1 = arith.truncf %0 : vector<128x16xf32> to vector<128x16xbf16>
    %c0_1 = arith.constant 0 : index
    %c0_2 = arith.constant 0 : index
    %2 = vector.load %arg2[%c0_1, %c0_2] : memref<16x256xbf16, #tpu.memory_space<vmem>>, vector<16x256xbf16>
    %cst = arith.constant dense<0.000000e+00> : vector<128x256xf32>
    %3 = tpu.matmul %1, %2, %cst {dimension_numbers = #tpu.dot_dimension_numbers<[1], [0], [0], [1], [0, 0, 1, 1], [], []>} : vector<128x16xbf16>, vector<16x256xbf16>, vector<128x256xf32> -> vector<128x256xf32>
    %4 = arith.truncf %3 : vector<128x256xf32> to vector<128x256xbf16>
    %c0_3 = arith.constant 0 : index
    %c0_4 = arith.constant 0 : index
    %5 = vector.load %arg3[%c0_3, %c0_4] : memref<1x256xbf16, #tpu.memory_space<vmem>>, vector<1x256xbf16>
    %6 = vector.broadcast %5 : vector<1x256xbf16> to vector<128x256xbf16>
    %7 = arith.addf %4, %6 : vector<128x256xbf16>
    %cst_5 = arith.constant 0.000000e+00 : bf16
    %8 = vector.broadcast %cst_5 : bf16 to vector<128x256xbf16>
    %9 = arith.maximumf %7, %8 : vector<128x256xbf16>
    %c0_6 = arith.constant 0 : index
    %c0_7 = arith.constant 0 : index
    %10 = vector.load %arg4[%c0_6, %c0_7] : memref<256x256xbf16, #tpu.memory_space<vmem>>, vector<256x256xbf16>
    %cst_8 = arith.constant dense<0.000000e+00> : vector<128x256xf32>
    %11 = tpu.matmul %9, %10, %cst_8 {dimension_numbers = #tpu.dot_dimension_numbers<[1], [0], [0], [1], [0, 0, 1, 1], [], []>} : vector<128x256xbf16>, vector<256x256xbf16>, vector<128x256xf32> -> vector<128x256xf32>
    %12 = arith.truncf %11 : vector<128x256xf32> to vector<128x256xbf16>
    %c0_9 = arith.constant 0 : index
    %c0_10 = arith.constant 0 : index
    %13 = vector.load %arg5[%c0_9, %c0_10] : memref<1x256xbf16, #tpu.memory_space<vmem>>, vector<1x256xbf16>
    %14 = vector.broadcast %13 : vector<1x256xbf16> to vector<128x256xbf16>
    %15 = arith.addf %12, %14 : vector<128x256xbf16>
    %cst_11 = arith.constant 0.000000e+00 : bf16
    %16 = vector.broadcast %cst_11 : bf16 to vector<128x256xbf16>
    %17 = arith.maximumf %15, %16 : vector<128x256xbf16>
    %c0_12 = arith.constant 0 : index
    %c0_13 = arith.constant 0 : index
    %18 = vector.load %arg6[%c0_12, %c0_13] : memref<256x128xbf16, #tpu.memory_space<vmem>>, vector<256x128xbf16>
    %cst_14 = arith.constant dense<0.000000e+00> : vector<128x128xf32>
    %19 = tpu.matmul %17, %18, %cst_14 {dimension_numbers = #tpu.dot_dimension_numbers<[1], [0], [0], [1], [0, 0, 1, 1], [], []>} : vector<128x256xbf16>, vector<256x128xbf16>, vector<128x128xf32> -> vector<128x128xf32>
    %20 = arith.truncf %19 : vector<128x128xf32> to vector<128x128xbf16>
    %c0_15 = arith.constant 0 : index
    %c0_16 = arith.constant 0 : index
    %21 = vector.load %arg7[%c0_15, %c0_16] : memref<1x128xbf16, #tpu.memory_space<vmem>>, vector<1x128xbf16>
    %22 = vector.broadcast %21 : vector<1x128xbf16> to vector<128x128xbf16>
    %23 = arith.addf %20, %22 : vector<128x128xbf16>
    %cst_17 = arith.constant 0.000000e+00 : bf16
    %24 = vector.broadcast %cst_17 : bf16 to vector<128x128xbf16>
    %25 = arith.maximumf %23, %24 : vector<128x128xbf16>
    %c0_18 = arith.constant 0 : index
    %c0_19 = arith.constant 0 : index
    %26 = vector.load %arg8[%c0_18, %c0_19] : memref<128x32xbf16, #tpu.memory_space<vmem>>, vector<128x32xbf16>
    %cst_20 = arith.constant dense<0.000000e+00> : vector<128x32xf32>
    %27 = tpu.matmul %25, %26, %cst_20 {dimension_numbers = #tpu.dot_dimension_numbers<[1], [0], [0], [1], [0, 0, 1, 1], [], []>} : vector<128x128xbf16>, vector<128x32xbf16>, vector<128x32xf32> -> vector<128x32xf32>
    %c0_21 = arith.constant 0 : index
    %c0_22 = arith.constant 0 : index
    %28 = vector.load %arg9[%c0_21, %c0_22] : memref<1x32xf32, #tpu.memory_space<vmem>>, vector<1x32xf32>
    %29 = vector.broadcast %28 : vector<1x32xf32> to vector<128x32xf32>
    %30 = arith.addf %27, %29 : vector<128x32xf32>
    %cst_23 = arith.constant 0.000000e+00 : f32
    %31 = vector.broadcast %cst_23 : f32 to vector<128x32xf32>
    %32 = arith.maximumf %30, %31 : vector<128x32xf32>
    %33 = tpu.transpose %32, [1, 0] : vector<128x32xf32> -> vector<32x128xf32>
    %34 = arith.truncf %33 : vector<32x128xf32> to vector<32x128xbf16>
    %c0_24 = arith.constant 0 : index
    %c0_25 = arith.constant 0 : index
    %35 = vector.load %arg10[%c0_24, %c0_25] : memref<1x32xbf16, #tpu.memory_space<vmem>>, vector<1x32xbf16>
    %cst_26 = arith.constant dense<0.000000e+00> : vector<1x128xf32>
    %36 = tpu.matmul %35, %34, %cst_26 {dimension_numbers = #tpu.dot_dimension_numbers<[1], [0], [0], [1], [0, 0, 1, 1], [], []>} : vector<1x32xbf16>, vector<32x128xbf16>, vector<1x128xf32> -> vector<1x128xf32>
    %c0_27 = arith.constant 0 : index
    %c0_28 = arith.constant 0 : index
    %37 = vector.load %arg11[%c0_27, %c0_28] : memref<1x1xf32, #tpu.memory_space<vmem>>, vector<1x1xf32>
    %38 = vector.broadcast %37 : vector<1x1xf32> to vector<1x128xf32>
    %39 = arith.addf %36, %38 : vector<1x128xf32>
    %c0_29 = arith.constant 0 : index
    %c0_30 = arith.constant 0 : index
    %40 = vector.load %arg12[%c0_29, %c0_30] : memref<1x128xf32, #tpu.memory_space<vmem>>, vector<1x128xf32>
    tpu.vector_store %arg12[%c0_29, %c0_30], %39 {strides = array<i32>} : memref<1x128xf32, #tpu.memory_space<vmem>>, vector<1x128xf32>,
    return
  }
  func.func @transform_0(%arg0: i32) -> (i32, i32) {
    %c0_i32 = arith.constant 0 : i32
    %c0_i32_0 = arith.constant 0 : i32
    return %arg0, %c0_i32 : i32, i32
  }
  func.func @transform_1(%arg0: i32) -> (i32, i32) {
    %c0_i32 = arith.constant 0 : i32
    %c0_i32_0 = arith.constant 0 : i32
    %c0_i32_1 = arith.constant 0 : i32
    return %c0_i32, %c0_i32_0 : i32, i32
  }
  func.func @transform_2(%arg0: i32) -> (i32, i32) {
    %c0_i32 = arith.constant 0 : i32
    %c0_i32_0 = arith.constant 0 : i32
    %c0_i32_1 = arith.constant 0 : i32
    return %c0_i32, %c0_i32_0 : i32, i32
  }
  func.func @transform_3(%arg0: i32) -> (i32, i32) {
    %c0_i32 = arith.constant 0 : i32
    %c0_i32_0 = arith.constant 0 : i32
    %c0_i32_1 = arith.constant 0 : i32
    return %c0_i32, %c0_i32_0 : i32, i32
  }
  func.func @transform_4(%arg0: i32) -> (i32, i32) {
    %c0_i32 = arith.constant 0 : i32
    %c0_i32_0 = arith.constant 0 : i32
    %c0_i32_1 = arith.constant 0 : i32
    return %c0_i32, %c0_i32_0 : i32, i32
  }
  func.func @transform_5(%arg0: i32) -> (i32, i32) {
    %c0_i32 = arith.constant 0 : i32
    %c0_i32_0 = arith.constant 0 : i32
    %c0_i32_1 = arith.constant 0 : i32
    return %c0_i32, %c0_i32_0 : i32, i32
  }
  func.func @transform_6(%arg0: i32) -> (i32, i32) {
    %c0_i32 = arith.constant 0 : i32
    %c0_i32_0 = arith.constant 0 : i32
    %c0_i32_1 = arith.constant 0 : i32
    return %c0_i32, %c0_i32_0 : i32, i32
  }
  func.func @transform_7(%arg0: i32) -> (i32, i32) {
    %c0_i32 = arith.constant 0 : i32
    %c0_i32_0 = arith.constant 0 : i32
    %c0_i32_1 = arith.constant 0 : i32
    return %c0_i32, %c0_i32_0 : i32, i32
  }
  func.func @transform_8(%arg0: i32) -> (i32, i32) {
    %c0_i32 = arith.constant 0 : i32
    %c0_i32_0 = arith.constant 0 : i32
    %c0_i32_1 = arith.constant 0 : i32
    return %c0_i32, %c0_i32_0 : i32, i32
  }
  func.func @transform_9(%arg0: i32) -> (i32, i32) {
    %c0_i32 = arith.constant 0 : i32
    %c0_i32_0 = arith.constant 0 : i32
    %c0_i32_1 = arith.constant 0 : i32
    return %c0_i32, %c0_i32_0 : i32, i32
  }
  func.func @transform_10(%arg0: i32) -> (i32, i32) {
    %c0_i32 = arith.constant 0 : i32
    %c0_i32_0 = arith.constant 0 : i32
    %c0_i32_1 = arith.constant 0 : i32
    return %c0_i32, %c0_i32_0 : i32, i32
  }
  func.func @transform_11(%arg0: i32) -> (i32, i32) {
    %c0_i32 = arith.constant 0 : i32
    %c0_i32_0 = arith.constant 0 : i32
    return %c0_i32, %arg0 : i32, i32
  }
}

</mosaic_0001>

<llo_original>
// kernel: value_forward.1
$region0: #{value_forward.1}
  #allocation0 [shape = 'u32[]', space=smem, size = 0x4, offset = 0x4, fixed_abs, tag = 'smem constant byte address 0x4 - core index']
  #allocation1 [shape = 'u32[144,128]{1,0:T(1,128)}', space=vmem, size = 0x12000, scoped, tag = 'internal scratch']
  #allocation2 [shape = 'f32[1,1]{1,0:T(1,128)S(1)}', space=vmem, size = 0x200, scoped, tag = 'scoped memory for value_forward.1']
  %s0 = inlined_call_operand.vmem [shape: f32[2,16], index: 0, kind: input, shape index: {}]
  %s1 = inlined_call_operand.vmem [shape: bf16[16,256], index: 1, kind: input, shape index: {}]
  %s2 = inlined_call_operand.vmem [shape: bf16[1,256], index: 2, kind: input, shape index: {}]
  %s3 = inlined_call_operand.hbm [shape: bf16[256,256], index: 3, kind: input, shape index: {}]
  %s4 = inlined_call_operand.vmem [shape: bf16[1,256], index: 4, kind: input, shape index: {}]
  %s5 = inlined_call_operand.hbm [shape: bf16[256,128], index: 5, kind: input, shape index: {}]
  %s6 = inlined_call_operand.vmem [shape: bf16[1,128], index: 6, kind: input, shape index: {}]
  %s7 = inlined_call_operand.vmem [shape: bf16[128,32], index: 7, kind: input, shape index: {}]
  %s8 = inlined_call_operand.vmem [shape: f32[1,32], index: 8, kind: input, shape index: {}]
  %s9 = inlined_call_operand.vmem [shape: bf16[1,32], index: 9, kind: input, shape index: {}]
  %s10 = inlined_call_operand.<no memory space> [shape: f32[1,1], index: 10, kind: input, shape index: {}]
  %s11 = inlined_call_operand.vmem [shape: f32[1,128], index: 11, kind: output, shape index: {}]
  %s12 = sld [smem:[#allocation0]]
  $region62: #{value_forward.1} parent=0
    _
  %s14 = ssub.s32 1, %s12
  %s15 = scalar_select 0, %s14, %s12
  %v16 = vstv %s10
  %17 = vst [vmem:[#allocation2] sm:$0x1] %v16
  $region1: #{value_forward.1} parent=0
    #allocation3 [shape = 'u8[131072]{0}', space=vmem, size = 0x20000, scoped, tag = 'input window, operand 3, single buffered']
    #allocation4 [shape = 's32[1]{0}', space=sflag, size = 0x4, scoped, tag = 'scoped memory for value_forward.1']
    #allocation5 [shape = 'u8[65536]{0}', space=vmem, size = 0x10000, scoped, tag = 'input window, operand 5, single buffered']
    #allocation6 [shape = 's32[1]{0}', space=sflag, size = 0x4, scoped, tag = 'scoped memory for value_forward.1']
    %18 = vsyncpa [#allocation4], 0
    %19 = vsyncpa [#allocation6], 0
    // Predicated region
    $region2: #{value_forward.1} parent=1 // pred_check
      _
    $region3: #{value_forward.1} parent=1 // pred_check_branch
      %21 = sbr.rel (0) target = $region5
    $region4: #{value_forward.1} parent=1 // pred_region
      _
    $region5: #{value_forward.1} parent=1 // pred_fallthru
      _
    // Predicated region
    $region6: #{value_forward.1} parent=1 // pred_check
      _
    $region7: #{value_forward.1} parent=1 // pred_check_branch
      %23 = sbr.rel (0) target = $region9
    $region8: #{value_forward.1} parent=1 // pred_region
      _
    $region9: #{value_forward.1} parent=1 // pred_fallthru
      _
    // Predicated region
    $region10: #{value_forward.1} parent=1 // pred_check
      _
    $region11: #{value_forward.1} parent=1 // pred_check_branch
      %25 = sbr.rel (0) target = $region13
    $region12: #{value_forward.1} parent=1 // pred_region
      _
    $region13: #{value_forward.1} parent=1 // pred_fallthru
      _
    // Predicated region
    $region14: #{value_forward.1} parent=1 // pred_check
      _
    $region15: #{value_forward.1} parent=1 // pred_check_branch
      %27 = sbr.rel (0) target = $region17
    $region16: #{value_forward.1} parent=1 // pred_region
      %s29 = ssub.s32 4096, 4096
      %30 = vsyncadd [#allocation4], %s29
      %s31 = sshll.u32 [#allocation3], 4
      %s32 = int_to_ptr.vmem [resolvable:$true] %s31
      %37 = dma.hbm_to_vmem [thread:$0]  %s3, 4096, %s32, [#allocation4], 128, 128, 8
    $region17: #{value_forward.1} parent=1 // pred_fallthru
      _
    // Predicated region
    $region18: #{value_forward.1} parent=1 // pred_check
      _
    $region19: #{value_forward.1} parent=1 // pred_check_branch
      %39 = sbr.rel (0) target = $region21
    $region20: #{value_forward.1} parent=1 // pred_region
      _
    $region21: #{value_forward.1} parent=1 // pred_fallthru
      _
    // Predicated region
    $region22: #{value_forward.1} parent=1 // pred_check
      _
    $region23: #{value_forward.1} parent=1 // pred_check_branch
      %41 = sbr.rel (0) target = $region25
    $region24: #{value_forward.1} parent=1 // pred_region
      %s43 = ssub.s32 2048, 2048
      %44 = vsyncadd [#allocation6], %s43
      %s45 = sshll.u32 [#allocation5], 4
      %s46 = int_to_ptr.vmem [resolvable:$true] %s45
      %51 = dma.hbm_to_vmem [thread:$0]  %s5, 2048, %s46, [#allocation6], 64, 64, 4
    $region25: #{value_forward.1} parent=1 // pred_fallthru
      _
    // Predicated region
    $region26: #{value_forward.1} parent=1 // pred_check
      _
    $region27: #{value_forward.1} parent=1 // pred_check_branch
      %53 = sbr.rel (0) target = $region29
    $region28: #{value_forward.1} parent=1 // pred_region
      _
    $region29: #{value_forward.1} parent=1 // pred_fallthru
      _
    // Predicated region
    $region30: #{value_forward.1} parent=1 // pred_check
      _
    $region31: #{value_forward.1} parent=1 // pred_check_branch
      %55 = sbr.rel (0) target = $region33
    $region32: #{value_forward.1} parent=1 // pred_region
      _
    $region33: #{value_forward.1} parent=1 // pred_fallthru
      _
    // Predicated region
    $region34: #{value_forward.1} parent=1 // pred_check
      _
    $region35: #{value_forward.1} parent=1 // pred_check_branch
      %57 = sbr.rel (0) target = $region37
    $region36: #{value_forward.1} parent=1 // pred_region
      _
    $region37: #{value_forward.1} parent=1 // pred_fallthru
      _
    // Predicated region
    $region38: #{value_forward.1} parent=1 // pred_check
      _
    $region39: #{value_forward.1} parent=1 // pred_check_branch
      %59 = sbr.rel (0) target = $region41
    $region40: #{value_forward.1} parent=1 // pred_region
      _
    $region41: #{value_forward.1} parent=1 // pred_fallthru
      _
    // Predicated region
    $region42: #{value_forward.1} parent=1 // pred_check
      _
    $region43: #{value_forward.1} parent=1 // pred_check_branch
      %61 = sbr.rel (0) target = $region45
    $region44: #{value_forward.1} parent=1 // pred_region
      _
    $region45: #{value_forward.1} parent=1 // pred_fallthru
      _
    // Predicated region
    $region46: #{value_forward.1} parent=1 // pred_check
      _
    $region47: #{value_forward.1} parent=1 // pred_check_branch
      %63 = sbr.rel (0) target = $region49
    $region48: #{value_forward.1} parent=1 // pred_region
      %64 = dma.done [#allocation4], 4096
    $region49: #{value_forward.1} parent=1 // pred_fallthru
      _
    // Predicated region
    $region50: #{value_forward.1} parent=1 // pred_check
      _
    $region51: #{value_forward.1} parent=1 // pred_check_branch
      %66 = sbr.rel (0) target = $region53
    $region52: #{value_forward.1} parent=1 // pred_region
      %67 = dma.done [#allocation6], 2048
    $region53: #{value_forward.1} parent=1 // pred_fallthru
      _
    %v69 = vld [vmem:[%s0] sm:$0xff]
    %v70 = vld [vmem:[%s0 + $0x8] sm:$0xff]
    %v71 = vld [vmem:[%s0 + $0x10] sm:$0xff]
    %v72 = vld [vmem:[%s0 + $0x18] sm:$0xff]
    %v73 = vld [vmem:[%s0 + $0x20] sm:$0xff]
    %v74 = vld [vmem:[%s0 + $0x28] sm:$0xff]
    %v75 = vld [vmem:[%s0 + $0x30] sm:$0xff]
    %v76 = vld [vmem:[%s0 + $0x38] sm:$0xff]
    %v77 = vld [vmem:[%s0 + $0x40] sm:$0xff]
    %v78 = vld [vmem:[%s0 + $0x48] sm:$0xff]
    %v79 = vld [vmem:[%s0 + $0x50] sm:$0xff]
    %v80 = vld [vmem:[%s0 + $0x58] sm:$0xff]
    %v81 = vld [vmem:[%s0 + $0x60] sm:$0xff]
    %v82 = vld [vmem:[%s0 + $0x68] sm:$0xff]
    %v83 = vld [vmem:[%s0 + $0x70] sm:$0xff]
    %v84 = vld [vmem:[%s0 + $0x78] sm:$0xff]
    %v85 = vpack.c.bf16 %v70, %v69
    %v86 = vpack.c.bf16 %v72, %v71
    %v87 = vpack.c.bf16 %v74, %v73
    %v88 = vpack.c.bf16 %v76, %v75
    %v89 = vpack.c.bf16 %v78, %v77
    %v90 = vpack.c.bf16 %v80, %v79
    %v91 = vpack.c.bf16 %v82, %v81
    %v92 = vpack.c.bf16 %v84, %v83
    %v93 = vld [vmem:[%s1] sm:$0xff]
    %v94 = vld [vmem:[%s1 + $0x8] sm:$0xff]
    %v97 = vunpack.c.l.b16 %v93
    %v98 = vunpack.c.h.b16 %v93
    %v99 = vunpack.c.l.b16 %v94
    %v100 = vunpack.c.h.b16 %v94
    %v101 = vpack.c.b16 %v99, %v97
    %v102 = vpack.c.b16 %v100, %v98
    %vm105 = vcmask 130048
    %v107 = vsel %vm105, %v85, 0
    %v110 = vsel %vm105, %v86, 0
    %v113 = vsel %vm105, %v87, 0
    %v116 = vsel %vm105, %v88, 0
    %v119 = vsel %vm105, %v89, 0
    %v122 = vsel %vm105, %v90, 0
    %v125 = vsel %vm105, %v91, 0
    %v128 = vsel %vm105, %v92, 0
    %130 = vmatprep.subr.bf16.mxu0 %v102
    %131 = vmatpush1.bf16.msra.mxu0 %v101
    %132 = vmatprep.subr.bf16.mxu0 0
    %133 = vmatpush1.bf16.msra.mxu0 0
    %134 = vmatprep.subr.bf16.mxu0 0
    %135 = vmatpush1.bf16.msra.mxu0 0
    %136 = vmatprep.subr.bf16.mxu0 0
    %137 = vmatpush1.bf16.msra.mxu0 0
    %138 = vmatprep.subr.bf16.mxu0 0
    %139 = vmatpush1.bf16.msra.mxu0 0
    %140 = vmatprep.subr.bf16.mxu0 0
    %141 = vmatpush1.bf16.msra.mxu0 0
    %142 = vmatprep.subr.bf16.mxu0 0
    %143 = vmatpush1.bf16.msra.mxu0 0
    %144 = vmatprep.subr.bf16.mxu0 0
    %145 = vmatpush1.bf16.msra.mxu0 0
    %146 = vmatprep.subr.bf16.mxu0 0
    %147 = vmatpush1.bf16.msra.mxu0 0
    %148 = vmatprep.subr.bf16.mxu0 0
    %149 = vmatpush1.bf16.msra.mxu0 0
    %150 = vmatprep.subr.bf16.mxu0 0
    %151 = vmatpush1.bf16.msra.mxu0 0
    %152 = vmatprep.subr.bf16.mxu0 0
    %153 = vmatpush1.bf16.msra.mxu0 0
    %154 = vmatprep.subr.bf16.mxu0 0
    %155 = vmatpush1.bf16.msra.mxu0 0
    %156 = vmatprep.subr.bf16.mxu0 0
    %157 = vmatpush1.bf16.msra.mxu0 0
    %158 = vmatprep.subr.bf16.mxu0 0
    %159 = vmatpush1.bf16.msra.mxu0 0
    %160 = vmatprep.subr.bf16.mxu0 0
    %161 = vmatpush1.bf16.msra.mxu0 0
    %162 = vmatprep.mubr.bf16.mxu0 0
    %163 = vmatmul.mubr.bf16.gmra.mrb[0].mxu0 %v107
    %v164 = vpop.f32.mrb[0].mxu0
    %v165 = vadd.f32 0.0, %v164
    %v166 = vpop.f32.mrb[0].mxu0
    %v167 = vadd.f32 0.0, %v166
    %v168 = vpop.f32.mrb[0].mxu0
    %v169 = vadd.f32 0.0, %v168
    %v170 = vpop.f32.mrb[0].mxu0
    %v171 = vadd.f32 0.0, %v170
    %172 = vmatprep.mubr.bf16.mxu0 0
    %173 = vmatmul.mubr.bf16.gmra.mrb[0].mxu0 %v110
    %v174 = vpop.f32.mrb[0].mxu0
    %v175 = vadd.f32 0.0, %v174
    %v176 = vpop.f32.mrb[0].mxu0
    %v177 = vadd.f32 0.0, %v176
    %v178 = vpop.f32.mrb[0].mxu0
    %v179 = vadd.f32 0.0, %v178
    %v180 = vpop.f32.mrb[0].mxu0
    %v181 = vadd.f32 0.0, %v180
    %182 = vmatprep.mubr.bf16.mxu0 0
    %183 = vmatmul.mubr.bf16.gmra.mrb[0].mxu0 %v113
    %v184 = vpop.f32.mrb[0].mxu0
    %v185 = vadd.f32 0.0, %v184
    %v186 = vpop.f32.mrb[0].mxu0
    %v187 = vadd.f32 0.0, %v186
    %v188 = vpop.f32.mrb[0].mxu0
    %v189 = vadd.f32 0.0, %v188
    %v190 = vpop.f32.mrb[0].mxu0
    %v191 = vadd.f32 0.0, %v190
    %192 = vmatprep.mubr.bf16.mxu0 0
    %193 = vmatmul.mubr.bf16.gmra.mrb[0].mxu0 %v116
    %v194 = vpop.f32.mrb[0].mxu0
    %v195 = vadd.f32 0.0, %v194
    %v196 = vpop.f32.mrb[0].mxu0
    %v197 = vadd.f32 0.0, %v196
    %v198 = vpop.f32.mrb[0].mxu0
    %v199 = vadd.f32 0.0, %v198
    %v200 = vpop.f32.mrb[0].mxu0
    %v201 = vadd.f32 0.0, %v200
    %202 = vmatprep.mubr.bf16.mxu0 0
    %203 = vmatmul.mubr.bf16.gmra.mrb[0].mxu0 %v119
    %v204 = vpop.f32.mrb[0].mxu0
    %v205 = vadd.f32 0.0, %v204
    %v206 = vpop.f32.mrb[0].mxu0
    %v207 = vadd.f32 0.0, %v206
    %v208 = vpop.f32.mrb[0].mxu0
    %v209 = vadd.f32 0.0, %v208
    %v210 = vpop.f32.mrb[0].mxu0
    %v211 = vadd.f32 0.0, %v210
    %212 = vmatprep.mubr.bf16.mxu0 0
    %213 = vmatmul.mubr.bf16.gmra.mrb[0].mxu0 %v122
    %v214 = vpop.f32.mrb[0].mxu0
    %v215 = vadd.f32 0.0, %v214
    %v216 = vpop.f32.mrb[0].mxu0
    %v217 = vadd.f32 0.0, %v216
    %v218 = vpop.f32.mrb[0].mxu0
    %v219 = vadd.f32 0.0, %v218
    %v220 = vpop.f32.mrb[0].mxu0
    %v221 = vadd.f32 0.0, %v220
    %222 = vmatprep.mubr.bf16.mxu0 0
    %223 = vmatmul.mubr.bf16.gmra.mrb[0].mxu0 %v125
    %v224 = vpop.f32.mrb[0].mxu0
    %v225 = vadd.f32 0.0, %v224
    %v226 = vpop.f32.mrb[0].mxu0
    %v227 = vadd.f32 0.0, %v226
    %v228 = vpop.f32.mrb[0].mxu0
    %v229 = vadd.f32 0.0, %v228
    %v230 = vpop.f32.mrb[0].mxu0
    %v231 = vadd.f32 0.0, %v230
    %232 = vmatprep.mubr.bf16.mxu0 0
    %233 = vmatmul.mubr.bf16.gmra.mrb[0].mxu0 %v128
    %v234 = vpop.f32.mrb[0].mxu0
    %v235 = vadd.f32 0.0, %v234
    %v236 = vpop.f32.mrb[0].mxu0
    %v237 = vadd.f32 0.0, %v236
    %v238 = vpop.f32.mrb[0].mxu0
    %v239 = vadd.f32 0.0, %v238
    %v240 = vpop.f32.mrb[0].mxu0
    %v241 = vadd.f32 0.0, %v240
    %242 = vdwg.mxu0
    %v243 = vpack.c.bf16 %v169, %v165
    %v244 = vpack.c.bf16 %v171, %v167
    %v245 = vpack.c.bf16 %v179, %v175
    %v246 = vpack.c.bf16 %v181, %v177
    %v247 = vpack.c.bf16 %v189, %v185
    %v248 = vpack.c.bf16 %v191, %v187
    %v249 = vpack.c.bf16 %v199, %v195
    %v250 = vpack.c.bf16 %v201, %v197
    %v251 = vpack.c.bf16 %v209, %v205
    %v252 = vpack.c.bf16 %v211, %v207
    %v253 = vpack.c.bf16 %v219, %v215
    %v254 = vpack.c.bf16 %v221, %v217
    %v255 = vpack.c.bf16 %v229, %v225
    %v256 = vpack.c.bf16 %v231, %v227
    %v257 = vpack.c.bf16 %v239, %v235
    %v258 = vpack.c.bf16 %v241, %v237
    %v259 = vld [vmem:[%s2] sm:$0x3]
    %v262 = vunpack.c.l.s4 1966171168
    %v263 = vunpack.c.0.s8 %v262
    %v264 = vlaneseq
    %v265 = vshrl.u32 %v264, 7
    %v266 = vsub.s32 %v263, %v265
    %v267 = vrot.slane %v259, %v266
    %v268 = vcombine.high %v267, %v267
    %v270 = vunpack.c.l.s4 1966171168
    %v271 = vunpack.c.0.s8 %v270
    %v272 = vlaneseq
    %v273 = vshrl.u32 %v272, 7
    %v274 = vsub.s32 %v271, %v273
    %v275 = vrot.slane %v267, %v274
    %v277 = vunpack.c.l.s4 1966171168
    %v278 = vunpack.c.0.s8 %v277
    %v279 = vlaneseq
    %v280 = vshrl.u32 %v279, 7
    %v281 = vsub.s32 %v278, %v280
    %v282 = vrot.slane %v268, %v281
    %v284 = vpack.i.b16 %v275, %v275
    %v286 = vlaneseq
    %v287 = vshrl.u32 %v286, 7
    %v288 = vsub.s32 0, %v287
    %v289 = vrot.slane %v284, %v288
    %v291 = vpack.i.b16 %v282, %v282
    %v293 = vlaneseq
    %v294 = vshrl.u32 %v293, 7
    %v295 = vsub.s32 0, %v294
    %v296 = vrot.slane %v291, %v295
    %v297 = vadd.bf16 %v243, %v289
    %v298 = vadd.bf16 %v244, %v296
    %v299 = vadd.bf16 %v245, %v289
    %v300 = vadd.bf16 %v246, %v296
    %v301 = vadd.bf16 %v247, %v289
    %v302 = vadd.bf16 %v248, %v296
    %v303 = vadd.bf16 %v249, %v289
    %v304 = vadd.bf16 %v250, %v296
    %v305 = vadd.bf16 %v251, %v289
    %v306 = vadd.bf16 %v252, %v296
    %v307 = vadd.bf16 %v253, %v289
    %v308 = vadd.bf16 %v254, %v296
    %v309 = vadd.bf16 %v255, %v289
    %v310 = vadd.bf16 %v256, %v296
    %v311 = vadd.bf16 %v257, %v289
    %v312 = vadd.bf16 %v258, %v296
    %v313 = vmax.bf16 %v297, 0
    %v314 = vmax.bf16 %v298, 0
    %v315 = vmax.bf16 %v299, 0
    %v316 = vmax.bf16 %v300, 0
    %v317 = vmax.bf16 %v301, 0
    %v318 = vmax.bf16 %v302, 0
    %v319 = vmax.bf16 %v303, 0
    %v320 = vmax.bf16 %v304, 0
    %v321 = vmax.bf16 %v305, 0
    %v322 = vmax.bf16 %v306, 0
    %v323 = vmax.bf16 %v307, 0
    %v324 = vmax.bf16 %v308, 0
    %v325 = vmax.bf16 %v309, 0
    %v326 = vmax.bf16 %v310, 0
    %v327 = vmax.bf16 %v311, 0
    %v328 = vmax.bf16 %v312, 0
    %v329 = vld [vmem:[#allocation3] sm:$0xff]
    %v330 = vld [vmem:[#allocation3 + $0x8] sm:$0xff]
    %v331 = vld [vmem:[#allocation3 + $0x10] sm:$0xff]
    %v332 = vld [vmem:[#allocation3 + $0x18] sm:$0xff]
    %v333 = vld [vmem:[#allocation3 + $0x20] sm:$0xff]
    %v334 = vld [vmem:[#allocation3 + $0x28] sm:$0xff]
    %v335 = vld [vmem:[#allocation3 + $0x30] sm:$0xff]
    %v336 = vld [vmem:[#allocation3 + $0x38] sm:$0xff]
    %v337 = vld [vmem:[#allocation3 + $0x40] sm:$0xff]
    %v338 = vld [vmem:[#allocation3 + $0x48] sm:$0xff]
    %v339 = vld [vmem:[#allocation3 + $0x50] sm:$0xff]
    %v340 = vld [vmem:[#allocation3 + $0x58] sm:$0xff]
    %v341 = vld [vmem:[#allocation3 + $0x60] sm:$0xff]
    %v342 = vld [vmem:[#allocation3 + $0x68] sm:$0xff]
    %v343 = vld [vmem:[#allocation3 + $0x70] sm:$0xff]
    %v344 = vld [vmem:[#allocation3 + $0x78] sm:$0xff]
    %v345 = vld [vmem:[#allocation3 + $0x80] sm:$0xff]
    %v346 = vld [vmem:[#allocation3 + $0x88] sm:$0xff]
    %v347 = vld [vmem:[#allocation3 + $0x90] sm:$0xff]
    %v348 = vld [vmem:[#allocation3 + $0x98] sm:$0xff]
    %v349 = vld [vmem:[#allocation3 + $0xa0] sm:$0xff]
    %v350 = vld [vmem:[#allocation3 + $0xa8] sm:$0xff]
    %v351 = vld [vmem:[#allocation3 + $0xb0] sm:$0xff]
    %v352 = vld [vmem:[#allocation3 + $0xb8] sm:$0xff]
    %v353 = vld [vmem:[#allocation3 + $0xc0] sm:$0xff]
    %v354 = vld [vmem:[#allocation3 + $0xc8] sm:$0xff]
    %v355 = vld [vmem:[#allocation3 + $0xd0] sm:$0xff]
    %v356 = vld [vmem:[#allocation3 + $0xd8] sm:$0xff]
    %v357 = vld [vmem:[#allocation3 + $0xe0] sm:$0xff]
    %v358 = vld [vmem:[#allocation3 + $0xe8] sm:$0xff]
    %v359 = vld [vmem:[#allocation3 + $0xf0] sm:$0xff]
    %v360 = vld [vmem:[#allocation3 + $0xf8] sm:$0xff]
    %v393 = vunpack.c.l.b16 %v329
    %v394 = vunpack.c.h.b16 %v329
    %v395 = vunpack.c.l.b16 %v330
    %v396 = vunpack.c.h.b16 %v330
    %v397 = vunpack.c.l.b16 %v331
    %v398 = vunpack.c.h.b16 %v331
    %v399 = vunpack.c.l.b16 %v332
    %v400 = vunpack.c.h.b16 %v332
    %v401 = vunpack.c.l.b16 %v333
    %v402 = vunpack.c.h.b16 %v333
    %v403 = vunpack.c.l.b16 %v334
    %v404 = vunpack.c.h.b16 %v334
    %v405 = vunpack.c.l.b16 %v335
    %v406 = vunpack.c.h.b16 %v335
    %v407 = vunpack.c.l.b16 %v336
    %v408 = vunpack.c.h.b16 %v336
    %v409 = vunpack.c.l.b16 %v337
    %v410 = vunpack.c.h.b16 %v337
    %v411 = vunpack.c.l.b16 %v338
    %v412 = vunpack.c.h.b16 %v338
    %v413 = vunpack.c.l.b16 %v339
    %v414 = vunpack.c.h.b16 %v339
    %v415 = vunpack.c.l.b16 %v340
    %v416 = vunpack.c.h.b16 %v340
    %v417 = vunpack.c.l.b16 %v341
    %v418 = vunpack.c.h.b16 %v341
    %v419 = vunpack.c.l.b16 %v342
    %v420 = vunpack.c.h.b16 %v342
    %v421 = vunpack.c.l.b16 %v343
    %v422 = vunpack.c.h.b16 %v343
    %v423 = vunpack.c.l.b16 %v344
    %v424 = vunpack.c.h.b16 %v344
    %v425 = vunpack.c.l.b16 %v345
    %v426 = vunpack.c.h.b16 %v345
    %v427 = vunpack.c.l.b16 %v346
    %v428 = vunpack.c.h.b16 %v346
    %v429 = vunpack.c.l.b16 %v347
    %v430 = vunpack.c.h.b16 %v347
    %v431 = vunpack.c.l.b16 %v348
    %v432 = vunpack.c.h.b16 %v348
    %v433 = vunpack.c.l.b16 %v349
    %v434 = vunpack.c.h.b16 %v349
    %v435 = vunpack.c.l.b16 %v350
    %v436 = vunpack.c.h.b16 %v350
    %v437 = vunpack.c.l.b16 %v351
    %v438 = vunpack.c.h.b16 %v351
    %v439 = vunpack.c.l.b16 %v352
    %v440 = vunpack.c.h.b16 %v352
    %v441 = vunpack.c.l.b16 %v353
    %v442 = vunpack.c.h.b16 %v353
    %v443 = vunpack.c.l.b16 %v354
    %v444 = vunpack.c.h.b16 %v354
    %v445 = vunpack.c.l.b16 %v355
    %v446 = vunpack.c.h.b16 %v355
    %v447 = vunpack.c.l.b16 %v356
    %v448 = vunpack.c.h.b16 %v356
    %v449 = vunpack.c.l.b16 %v357
    %v450 = vunpack.c.h.b16 %v357
    %v451 = vunpack.c.l.b16 %v358
    %v452 = vunpack.c.h.b16 %v358
    %v453 = vunpack.c.l.b16 %v359
    %v454 = vunpack.c.h.b16 %v359
    %v455 = vunpack.c.l.b16 %v360
    %v456 = vunpack.c.h.b16 %v360
    %v457 = vpack.c.b16 %v395, %v393
    %v458 = vpack.c.b16 %v396, %v394
    %v459 = vpack.c.b16 %v399, %v397
    %v460 = vpack.c.b16 %v400, %v398
    %v461 = vpack.c.b16 %v403, %v401
    %v462 = vpack.c.b16 %v404, %v402
    %v463 = vpack.c.b16 %v407, %v405
    %v464 = vpack.c.b16 %v408, %v406
    %v465 = vpack.c.b16 %v411, %v409
    %v466 = vpack.c.b16 %v412, %v410
    %v467 = vpack.c.b16 %v415, %v413
    %v468 = vpack.c.b16 %v416, %v414
    %v469 = vpack.c.b16 %v419, %v417
    %v470 = vpack.c.b16 %v420, %v418
    %v471 = vpack.c.b16 %v423, %v421
    %v472 = vpack.c.b16 %v424, %v422
    %v473 = vpack.c.b16 %v427, %v425
    %v474 = vpack.c.b16 %v428, %v426
    %v475 = vpack.c.b16 %v431, %v429
    %v476 = vpack.c.b16 %v432, %v430
    %v477 = vpack.c.b16 %v435, %v433
    %v478 = vpack.c.b16 %v436, %v434
    %v479 = vpack.c.b16 %v439, %v437
    %v480 = vpack.c.b16 %v440, %v438
    %v481 = vpack.c.b16 %v443, %v441
    %v482 = vpack.c.b16 %v444, %v442
    %v483 = vpack.c.b16 %v447, %v445
    %v484 = vpack.c.b16 %v448, %v446
    %v485 = vpack.c.b16 %v451, %v449
    %v486 = vpack.c.b16 %v452, %v450
    %v487 = vpack.c.b16 %v455, %v453
    %v488 = vpack.c.b16 %v456, %v454
    %521 = vmatprep.subr.bf16.mxu0 %v458
    %522 = vmatpush1.bf16.msra.mxu0 %v457
    %523 = vmatprep.subr.bf16.mxu0 %v460
    %524 = vmatpush1.bf16.msra.mxu0 %v459
    %525 = vmatprep.subr.bf16.mxu0 %v462
    %526 = vmatpush1.bf16.msra.mxu0 %v461
    %527 = vmatprep.subr.bf16.mxu0 %v464
    %528 = vmatpush1.bf16.msra.mxu0 %v463
    %529 = vmatprep.subr.bf16.mxu0 %v466
    %530 = vmatpush1.bf16.msra.mxu0 %v465
    %531 = vmatprep.subr.bf16.mxu0 %v468
    %532 = vmatpush1.bf16.msra.mxu0 %v467
    %533 = vmatprep.subr.bf16.mxu0 %v470
    %534 = vmatpush1.bf16.msra.mxu0 %v469
    %535 = vmatprep.subr.bf16.mxu0 %v472
    %536 = vmatpush1.bf16.msra.mxu0 %v471
    %537 = vmatprep.subr.bf16.mxu0 %v474
    %538 = vmatpush1.bf16.msra.mxu0 %v473
    %539 = vmatprep.subr.bf16.mxu0 %v476
    %540 = vmatpush1.bf16.msra.mxu0 %v475
    %541 = vmatprep.subr.bf16.mxu0 %v478
    %542 = vmatpush1.bf16.msra.mxu0 %v477
    %543 = vmatprep.subr.bf16.mxu0 %v480
    %544 = vmatpush1.bf16.msra.mxu0 %v479
    %545 = vmatprep.subr.bf16.mxu0 %v482
    %546 = vmatpush1.bf16.msra.mxu0 %v481
    %547 = vmatprep.subr.bf16.mxu0 %v484
    %548 = vmatpush1.bf16.msra.mxu0 %v483
    %549 = vmatprep.subr.bf16.mxu0 %v486
    %550 = vmatpush1.bf16.msra.mxu0 %v485
    %551 = vmatprep.subr.bf16.mxu0 %v488
    %552 = vmatpush1.bf16.msra.mxu0 %v487
    %553 = vmatprep.mubr.bf16.mxu0 %v314
    %554 = vmatmul.mubr.bf16.gmra.mrb[0].mxu0 %v313
    %v555 = vpop.f32.mrb[0].mxu0
    %v556 = vadd.f32 0.0, %v555
    %v557 = vpop.f32.mrb[0].mxu0
    %v558 = vadd.f32 0.0, %v557
    %v559 = vpop.f32.mrb[0].mxu0
    %v560 = vadd.f32 0.0, %v559
    %v561 = vpop.f32.mrb[0].mxu0
    %v562 = vadd.f32 0.0, %v561
    %563 = vmatprep.mubr.bf16.mxu0 %v316
    %564 = vmatmul.mubr.bf16.gmra.mrb[0].mxu0 %v315
    %v565 = vpop.f32.mrb[0].mxu0
    %v566 = vadd.f32 0.0, %v565
    %v567 = vpop.f32.mrb[0].mxu0
    %v568 = vadd.f32 0.0, %v567
    %v569 = vpop.f32.mrb[0].mxu0
    %v570 = vadd.f32 0.0, %v569
    %v571 = vpop.f32.mrb[0].mxu0
    %v572 = vadd.f32 0.0, %v571
    %573 = vmatprep.mubr.bf16.mxu0 %v318
    %574 = vmatmul.mubr.bf16.gmra.mrb[0].mxu0 %v317
    %v575 = vpop.f32.mrb[0].mxu0
    %v576 = vadd.f32 0.0, %v575
    %v577 = vpop.f32.mrb[0].mxu0
    %v578 = vadd.f32 0.0, %v577
    %v579 = vpop.f32.mrb[0].mxu0
    %v580 = vadd.f32 0.0, %v579
    %v581 = vpop.f32.mrb[0].mxu0
    %v582 = vadd.f32 0.0, %v581
    %583 = vmatprep.mubr.bf16.mxu0 %v320
    %584 = vmatmul.mubr.bf16.gmra.mrb[0].mxu0 %v319
    %v585 = vpop.f32.mrb[0].mxu0
    %v586 = vadd.f32 0.0, %v585
    %v587 = vpop.f32.mrb[0].mxu0
    %v588 = vadd.f32 0.0, %v587
    %v589 = vpop.f32.mrb[0].mxu0
    %v590 = vadd.f32 0.0, %v589
    %v591 = vpop.f32.mrb[0].mxu0
    %v592 = vadd.f32 0.0, %v591
    %593 = vmatprep.mubr.bf16.mxu0 %v322
    %594 = vmatmul.mubr.bf16.gmra.mrb[0].mxu0 %v321
    %v595 = vpop.f32.mrb[0].mxu0
    %v596 = vadd.f32 0.0, %v595
    %v597 = vpop.f32.mrb[0].mxu0
    %v598 = vadd.f32 0.0, %v597
    %v599 = vpop.f32.mrb[0].mxu0
    %v600 = vadd.f32 0.0, %v599
    %v601 = vpop.f32.mrb[0].mxu0
    %v602 = vadd.f32 0.0, %v601
    %603 = vmatprep.mubr.bf16.mxu0 %v324
    %604 = vmatmul.mubr.bf16.gmra.mrb[0].mxu0 %v323
    %v605 = vpop.f32.mrb[0].mxu0
    %v606 = vadd.f32 0.0, %v605
    %v607 = vpop.f32.mrb[0].mxu0
    %v608 = vadd.f32 0.0, %v607
    %v609 = vpop.f32.mrb[0].mxu0
    %v610 = vadd.f32 0.0, %v609
    %v611 = vpop.f32.mrb[0].mxu0
    %v612 = vadd.f32 0.0, %v611
    %613 = vmatprep.mubr.bf16.mxu0 %v326
    %614 = vmatmul.mubr.bf16.gmra.mrb[0].mxu0 %v325
    %v615 = vpop.f32.mrb[0].mxu0
    %v616 = vadd.f32 0.0, %v615
    %v617 = vpop.f32.mrb[0].mxu0
    %v618 = vadd.f32 0.0, %v617
    %v619 = vpop.f32.mrb[0].mxu0
    %v620 = vadd.f32 0.0, %v619
    %v621 = vpop.f32.mrb[0].mxu0
    %v622 = vadd.f32 0.0, %v621
    %623 = vmatprep.mubr.bf16.mxu0 %v328
    %624 = vmatmul.mubr.bf16.gmra.mrb[0].mxu0 %v327
    %v625 = vpop.f32.mrb[0].mxu0
    %v626 = vadd.f32 0.0, %v625
    %v627 = vpop.f32.mrb[0].mxu0
    %v628 = vadd.f32 0.0, %v627
    %v629 = vpop.f32.mrb[0].mxu0
    %v630 = vadd.f32 0.0, %v629
    %v631 = vpop.f32.mrb[0].mxu0
    %v632 = vadd.f32 0.0, %v631
    %633 = vdwg.mxu0
    %v634 = vpack.c.bf16 %v560, %v556
    %v635 = vpack.c.bf16 %v562, %v558
    %v636 = vpack.c.bf16 %v570, %v566
    %v637 = vpack.c.bf16 %v572, %v568
    %v638 = vpack.c.bf16 %v580, %v576
    %v639 = vpack.c.bf16 %v582, %v578
    %v640 = vpack.c.bf16 %v590, %v586
    %v641 = vpack.c.bf16 %v592, %v588
    %v642 = vpack.c.bf16 %v600, %v596
    %v643 = vpack.c.bf16 %v602, %v598
    %v644 = vpack.c.bf16 %v610, %v606
    %v645 = vpack.c.bf16 %v612, %v608
    %v646 = vpack.c.bf16 %v620, %v616
    %v647 = vpack.c.bf16 %v622, %v618
    %v648 = vpack.c.bf16 %v630, %v626
    %v649 = vpack.c.bf16 %v632, %v628
    %v650 = vld [vmem:[%s4] sm:$0x3]
    %v653 = vunpack.c.l.s4 1966171168
    %v654 = vunpack.c.0.s8 %v653
    %v655 = vlaneseq
    %v656 = vshrl.u32 %v655, 7
    %v657 = vsub.s32 %v654, %v656
    %v658 = vrot.slane %v650, %v657
    %v659 = vcombine.high %v658, %v658
    %v661 = vunpack.c.l.s4 1966171168
    %v662 = vunpack.c.0.s8 %v661
    %v663 = vlaneseq
    %v664 = vshrl.u32 %v663, 7
    %v665 = vsub.s32 %v662, %v664
    %v666 = vrot.slane %v658, %v665
    %v668 = vunpack.c.l.s4 1966171168
    %v669 = vunpack.c.0.s8 %v668
    %v670 = vlaneseq
    %v671 = vshrl.u32 %v670, 7
    %v672 = vsub.s32 %v669, %v671
    %v673 = vrot.slane %v659, %v672
    %v675 = vpack.i.b16 %v666, %v666
    %v677 = vlaneseq
    %v678 = vshrl.u32 %v677, 7
    %v679 = vsub.s32 0, %v678
    %v680 = vrot.slane %v675, %v679
    %v682 = vpack.i.b16 %v673, %v673
    %v684 = vlaneseq
    %v685 = vshrl.u32 %v684, 7
    %v686 = vsub.s32 0, %v685
    %v687 = vrot.slane %v682, %v686
    %v688 = vadd.bf16 %v634, %v680
    %v689 = vadd.bf16 %v635, %v687
    %v690 = vadd.bf16 %v636, %v680
    %v691 = vadd.bf16 %v637, %v687
    %v692 = vadd.bf16 %v638, %v680
    %v693 = vadd.bf16 %v639, %v687
    %v694 = vadd.bf16 %v640, %v680
    %v695 = vadd.bf16 %v641, %v687
    %v696 = vadd.bf16 %v642, %v680
    %v697 = vadd.bf16 %v643, %v687
    %v698 = vadd.bf16 %v644, %v680
    %v699 = vadd.bf16 %v645, %v687
    %v700 = vadd.bf16 %v646, %v680
    %v701 = vadd.bf16 %v647, %v687
    %v702 = vadd.bf16 %v648, %v680
    %v703 = vadd.bf16 %v649, %v687
    %v704 = vmax.bf16 %v688, 0
    %v705 = vmax.bf16 %v689, 0
    %v706 = vmax.bf16 %v690, 0
    %v707 = vmax.bf16 %v691, 0
    %v708 = vmax.bf16 %v692, 0
    %v709 = vmax.bf16 %v693, 0
    %v710 = vmax.bf16 %v694, 0
    %v711 = vmax.bf16 %v695, 0
    %v712 = vmax.bf16 %v696, 0
    %v713 = vmax.bf16 %v697, 0
    %v714 = vmax.bf16 %v698, 0
    %v715 = vmax.bf16 %v699, 0
    %v716 = vmax.bf16 %v700, 0
    %v717 = vmax.bf16 %v701, 0
    %v718 = vmax.bf16 %v702, 0
    %v719 = vmax.bf16 %v703, 0
    %v720 = vld [vmem:[#allocation5] sm:$0xf]
    %v721 = vld [vmem:[#allocation5 + $0x4] sm:$0xf]
    %v722 = vld [vmem:[#allocation5 + $0x8] sm:$0xf]
    %v723 = vld [vmem:[#allocation5 + $0xc] sm:$0xf]
    %v724 = vld [vmem:[#allocation5 + $0x10] sm:$0xf]
    %v725 = vld [vmem:[#allocation5 + $0x14] sm:$0xf]
    %v726 = vld [vmem:[#allocation5 + $0x18] sm:$0xf]
    %v727 = vld [vmem:[#allocation5 + $0x1c] sm:$0xf]
    %v728 = vld [vmem:[#allocation5 + $0x20] sm:$0xf]
    %v729 = vld [vmem:[#allocation5 + $0x24] sm:$0xf]
    %v730 = vld [vmem:[#allocation5 + $0x28] sm:$0xf]
    %v731 = vld [vmem:[#allocation5 + $0x2c] sm:$0xf]
    %v732 = vld [vmem:[#allocation5 + $0x30] sm:$0xf]
    %v733 = vld [vmem:[#allocation5 + $0x34] sm:$0xf]
    %v734 = vld [vmem:[#allocation5 + $0x38] sm:$0xf]
    %v735 = vld [vmem:[#allocation5 + $0x3c] sm:$0xf]
    %v736 = vld [vmem:[#allocation5 + $0x40] sm:$0xf]
    %v737 = vld [vmem:[#allocation5 + $0x44] sm:$0xf]
    %v738 = vld [vmem:[#allocation5 + $0x48] sm:$0xf]
    %v739 = vld [vmem:[#allocation5 + $0x4c] sm:$0xf]
    %v740 = vld [vmem:[#allocation5 + $0x50] sm:$0xf]
    %v741 = vld [vmem:[#allocation5 + $0x54] sm:$0xf]
    %v742 = vld [vmem:[#allocation5 + $0x58] sm:$0xf]
    %v743 = vld [vmem:[#allocation5 + $0x5c] sm:$0xf]
    %v744 = vld [vmem:[#allocation5 + $0x60] sm:$0xf]
    %v745 = vld [vmem:[#allocation5 + $0x64] sm:$0xf]
    %v746 = vld [vmem:[#allocation5 + $0x68] sm:$0xf]
    %v747 = vld [vmem:[#allocation5 + $0x6c] sm:$0xf]
    %v748 = vld [vmem:[#allocation5 + $0x70] sm:$0xf]
    %v749 = vld [vmem:[#allocation5 + $0x74] sm:$0xf]
    %v750 = vld [vmem:[#allocation5 + $0x78] sm:$0xf]
    %v751 = vld [vmem:[#allocation5 + $0x7c] sm:$0xf]
    %v784 = vunpack.c.l.b16 %v720
    %v785 = vunpack.c.l.b16 %v721
    %v786 = vunpack.c.l.b16 %v722
    %v787 = vunpack.c.l.b16 %v723
    %v788 = vunpack.c.l.b16 %v724
    %v789 = vunpack.c.l.b16 %v725
    %v790 = vunpack.c.l.b16 %v726
    %v791 = vunpack.c.l.b16 %v727
    %v792 = vunpack.c.l.b16 %v728
    %v793 = vunpack.c.l.b16 %v729
    %v794 = vunpack.c.l.b16 %v730
    %v795 = vunpack.c.l.b16 %v731
    %v796 = vunpack.c.l.b16 %v732
    %v797 = vunpack.c.l.b16 %v733
    %v798 = vunpack.c.l.b16 %v734
    %v799 = vunpack.c.l.b16 %v735
    %v800 = vunpack.c.l.b16 %v736
    %v801 = vunpack.c.l.b16 %v737
    %v802 = vunpack.c.l.b16 %v738
    %v803 = vunpack.c.l.b16 %v739
    %v804 = vunpack.c.l.b16 %v740
    %v805 = vunpack.c.l.b16 %v741
    %v806 = vunpack.c.l.b16 %v742
    %v807 = vunpack.c.l.b16 %v743
    %v808 = vunpack.c.l.b16 %v744
    %v809 = vunpack.c.l.b16 %v745
    %v810 = vunpack.c.l.b16 %v746
    %v811 = vunpack.c.l.b16 %v747
    %v812 = vunpack.c.l.b16 %v748
    %v813 = vunpack.c.l.b16 %v749
    %v814 = vunpack.c.l.b16 %v750
    %v815 = vunpack.c.l.b16 %v751
    %v816 = vpack.c.b16 %v785, %v784
    %v817 = vpack.c.b16 %v787, %v786
    %v818 = vpack.c.b16 %v789, %v788
    %v819 = vpack.c.b16 %v791, %v790
    %v820 = vpack.c.b16 %v793, %v792
    %v821 = vpack.c.b16 %v795, %v794
    %v822 = vpack.c.b16 %v797, %v796
    %v823 = vpack.c.b16 %v799, %v798
    %v824 = vpack.c.b16 %v801, %v800
    %v825 = vpack.c.b16 %v803, %v802
    %v826 = vpack.c.b16 %v805, %v804
    %v827 = vpack.c.b16 %v807, %v806
    %v828 = vpack.c.b16 %v809, %v808
    %v829 = vpack.c.b16 %v811, %v810
    %v830 = vpack.c.b16 %v813, %v812
    %v831 = vpack.c.b16 %v815, %v814
    %848 = vmatprep.subr.bf16.mxu0 0
    %849 = vmatpush1.bf16.msra.mxu0 %v816
    %850 = vmatprep.subr.bf16.mxu0 0
    %851 = vmatpush1.bf16.msra.mxu0 %v817
    %852 = vmatprep.subr.bf16.mxu0 0
    %853 = vmatpush1.bf16.msra.mxu0 %v818
    %854 = vmatprep.subr.bf16.mxu0 0
    %855 = vmatpush1.bf16.msra.mxu0 %v819
    %856 = vmatprep.subr.bf16.mxu0 0
    %857 = vmatpush1.bf16.msra.mxu0 %v820
    %858 = vmatprep.subr.bf16.mxu0 0
    %859 = vmatpush1.bf16.msra.mxu0 %v821
    %860 = vmatprep.subr.bf16.mxu0 0
    %861 = vmatpush1.bf16.msra.mxu0 %v822
    %862 = vmatprep.subr.bf16.mxu0 0
    %863 = vmatpush1.bf16.msra.mxu0 %v823
    %864 = vmatprep.subr.bf16.mxu0 0
    %865 = vmatpush1.bf16.msra.mxu0 %v824
    %866 = vmatprep.subr.bf16.mxu0 0
    %867 = vmatpush1.bf16.msra.mxu0 %v825
    %868 = vmatprep.subr.bf16.mxu0 0
    %869 = vmatpush1.bf16.msra.mxu0 %v826
    %870 = vmatprep.subr.bf16.mxu0 0
    %871 = vmatpush1.bf16.msra.mxu0 %v827
    %872 = vmatprep.subr.bf16.mxu0 0
    %873 = vmatpush1.bf16.msra.mxu0 %v828
    %874 = vmatprep.subr.bf16.mxu0 0
    %875 = vmatpush1.bf16.msra.mxu0 %v829
    %876 = vmatprep.subr.bf16.mxu0 0
    %877 = vmatpush1.bf16.msra.mxu0 %v830
    %878 = vmatprep.subr.bf16.mxu0 0
    %879 = vmatpush1.bf16.msra.mxu0 %v831
    %880 = vmatprep.mubr.bf16.mxu0 %v705
    %881 = vmatmul.mubr.bf16.gmra.mrb[0].mxu0 %v704
    %v882 = vpop.f32.mrb[0].mxu0
    %v883 = vadd.f32 0.0, %v882
    %v884 = vpop.f32.mrb[0].mxu0
    %v885 = vpop.f32.mrb[0].mxu0
    %v886 = vadd.f32 0.0, %v885
    %v887 = vpop.f32.mrb[0].mxu0
    %888 = vmatprep.mubr.bf16.mxu0 %v707
    %889 = vmatmul.mubr.bf16.gmra.mrb[0].mxu0 %v706
    %v890 = vpop.f32.mrb[0].mxu0
    %v891 = vadd.f32 0.0, %v890
    %v892 = vpop.f32.mrb[0].mxu0
    %v893 = vpop.f32.mrb[0].mxu0
    %v894 = vadd.f32 0.0, %v893
    %v895 = vpop.f32.mrb[0].mxu0
    %896 = vmatprep.mubr.bf16.mxu0 %v709
    %897 = vmatmul.mubr.bf16.gmra.mrb[0].mxu0 %v708
    %v898 = vpop.f32.mrb[0].mxu0
    %v899 = vadd.f32 0.0, %v898
    %v900 = vpop.f32.mrb[0].mxu0
    %v901 = vpop.f32.mrb[0].mxu0
    %v902 = vadd.f32 0.0, %v901
    %v903 = vpop.f32.mrb[0].mxu0
    %904 = vmatprep.mubr.bf16.mxu0 %v711
    %905 = vmatmul.mubr.bf16.gmra.mrb[0].mxu0 %v710
    %v906 = vpop.f32.mrb[0].mxu0
    %v907 = vadd.f32 0.0, %v906
    %v908 = vpop.f32.mrb[0].mxu0
    %v909 = vpop.f32.mrb[0].mxu0
    %v910 = vadd.f32 0.0, %v909
    %v911 = vpop.f32.mrb[0].mxu0
    %912 = vmatprep.mubr.bf16.mxu0 %v713
    %913 = vmatmul.mubr.bf16.gmra.mrb[0].mxu0 %v712
    %v914 = vpop.f32.mrb[0].mxu0
    %v915 = vadd.f32 0.0, %v914
    %v916 = vpop.f32.mrb[0].mxu0
    %v917 = vpop.f32.mrb[0].mxu0
    %v918 = vadd.f32 0.0, %v917
    %v919 = vpop.f32.mrb[0].mxu0
    %920 = vmatprep.mubr.bf16.mxu0 %v715
    %921 = vmatmul.mubr.bf16.gmra.mrb[0].mxu0 %v714
    %v922 = vpop.f32.mrb[0].mxu0
    %v923 = vadd.f32 0.0, %v922
    %v924 = vpop.f32.mrb[0].mxu0
    %v925 = vpop.f32.mrb[0].mxu0
    %v926 = vadd.f32 0.0, %v925
    %v927 = vpop.f32.mrb[0].mxu0
    %928 = vmatprep.mubr.bf16.mxu0 %v717
    %929 = vmatmul.mubr.bf16.gmra.mrb[0].mxu0 %v716
    %v930 = vpop.f32.mrb[0].mxu0
    %v931 = vadd.f32 0.0, %v930
    %v932 = vpop.f32.mrb[0].mxu0
    %v933 = vpop.f32.mrb[0].mxu0
    %v934 = vadd.f32 0.0, %v933
    %v935 = vpop.f32.mrb[0].mxu0
    %936 = vmatprep.mubr.bf16.mxu0 %v719
    %937 = vmatmul.mubr.bf16.gmra.mrb[0].mxu0 %v718
    %v938 = vpop.f32.mrb[0].mxu0
    %v939 = vadd.f32 0.0, %v938
    %v940 = vpop.f32.mrb[0].mxu0
    %v941 = vpop.f32.mrb[0].mxu0
    %v942 = vadd.f32 0.0, %v941
    %v943 = vpop.f32.mrb[0].mxu0
    %944 = vdwg.mxu0
    %v945 = vpack.c.bf16 %v886, %v883
    %v946 = vpack.c.bf16 %v894, %v891
    %v947 = vpack.c.bf16 %v902, %v899
    %v948 = vpack.c.bf16 %v910, %v907
    %v949 = vpack.c.bf16 %v918, %v915
    %v950 = vpack.c.bf16 %v926, %v923
    %v951 = vpack.c.bf16 %v934, %v931
    %v952 = vpack.c.bf16 %v942, %v939
    %v953 = vld [vmem:[%s6] sm:$0x1]
    %v955 = vpack.i.b16 %v953, %v953
    %v957 = vlaneseq
    %v958 = vshrl.u32 %v957, 7
    %v959 = vsub.s32 0, %v958
    %v960 = vrot.slane %v955, %v959
    %v961 = vadd.bf16 %v945, %v960
    %v962 = vadd.bf16 %v946, %v960
    %v963 = vadd.bf16 %v947, %v960
    %v964 = vadd.bf16 %v948, %v960
    %v965 = vadd.bf16 %v949, %v960
    %v966 = vadd.bf16 %v950, %v960
    %v967 = vadd.bf16 %v951, %v960
    %v968 = vadd.bf16 %v952, %v960
    %v969 = vmax.bf16 %v961, 0
    %v970 = vmax.bf16 %v962, 0
    %v971 = vmax.bf16 %v963, 0
    %v972 = vmax.bf16 %v964, 0
    %v973 = vmax.bf16 %v965, 0
    %v974 = vmax.bf16 %v966, 0
    %v975 = vmax.bf16 %v967, 0
    %v976 = vmax.bf16 %v968, 0
    %v977 = vld [vmem:[%s7] sm:$0xf]
    %v978 = vld [vmem:[%s7 + $0x4] sm:$0xf]
    %v979 = vld [vmem:[%s7 + $0x8] sm:$0xf]
    %v980 = vld [vmem:[%s7 + $0xc] sm:$0xf]
    %v981 = vld [vmem:[%s7 + $0x10] sm:$0xf]
    %v982 = vld [vmem:[%s7 + $0x14] sm:$0xf]
    %v983 = vld [vmem:[%s7 + $0x18] sm:$0xf]
    %v984 = vld [vmem:[%s7 + $0x1c] sm:$0xf]
    %v985 = vld [vmem:[%s7 + $0x20] sm:$0xf]
    %v986 = vld [vmem:[%s7 + $0x24] sm:$0xf]
    %v987 = vld [vmem:[%s7 + $0x28] sm:$0xf]
    %v988 = vld [vmem:[%s7 + $0x2c] sm:$0xf]
    %v989 = vld [vmem:[%s7 + $0x30] sm:$0xf]
    %v990 = vld [vmem:[%s7 + $0x34] sm:$0xf]
    %v991 = vld [vmem:[%s7 + $0x38] sm:$0xf]
    %v992 = vld [vmem:[%s7 + $0x3c] sm:$0xf]
    %v993 = vld [vmem:[%s8] sm:$0x1]
    %v995 = vlaneseq
    %v996 = vshrl.u32 %v995, 7
    %v997 = vsub.s32 0, %v996
    %v998 = vrot.slane %v993, %v997
    %v1016 = vunpack.c.l.b16 %v977
    %v1017 = vunpack.c.l.b16 %v978
    %v1018 = vunpack.c.l.b16 %v979
    %v1019 = vunpack.c.l.b16 %v980
    %v1020 = vunpack.c.l.b16 %v981
    %v1021 = vunpack.c.l.b16 %v982
    %v1022 = vunpack.c.l.b16 %v983
    %v1023 = vunpack.c.l.b16 %v984
    %v1024 = vunpack.c.l.b16 %v985
    %v1025 = vunpack.c.l.b16 %v986
    %v1026 = vunpack.c.l.b16 %v987
    %v1027 = vunpack.c.l.b16 %v988
    %v1028 = vunpack.c.l.b16 %v989
    %v1029 = vunpack.c.l.b16 %v990
    %v1030 = vunpack.c.l.b16 %v991
    %v1031 = vunpack.c.l.b16 %v992
    %v1032 = vpack.c.b16 %v1017, %v1016
    %v1033 = vpack.c.b16 %v1019, %v1018
    %v1034 = vpack.c.b16 %v1021, %v1020
    %v1035 = vpack.c.b16 %v1023, %v1022
    %v1036 = vpack.c.b16 %v1025, %v1024
    %v1037 = vpack.c.b16 %v1027, %v1026
    %v1038 = vpack.c.b16 %v1029, %v1028
    %v1039 = vpack.c.b16 %v1031, %v1030
    %1048 = vmatprep.subr.bf16.mxu0 0
    %1049 = vmatpush1.bf16.msra.mxu0 %v1032
    %1050 = vmatprep.subr.bf16.mxu0 0
    %1051 = vmatpush1.bf16.msra.mxu0 %v1033
    %1052 = vmatprep.subr.bf16.mxu0 0
    %1053 = vmatpush1.bf16.msra.mxu0 %v1034
    %1054 = vmatprep.subr.bf16.mxu0 0
    %1055 = vmatpush1.bf16.msra.mxu0 %v1035
    %1056 = vmatprep.subr.bf16.mxu0 0
    %1057 = vmatpush1.bf16.msra.mxu0 %v1036
    %1058 = vmatprep.subr.bf16.mxu0 0
    %1059 = vmatpush1.bf16.msra.mxu0 %v1037
    %1060 = vmatprep.subr.bf16.mxu0 0
    %1061 = vmatpush1.bf16.msra.mxu0 %v1038
    %1062 = vmatprep.subr.bf16.mxu0 0
    %1063 = vmatpush1.bf16.msra.mxu0 %v1039
    %1064 = vmatprep.subr.bf16.mxu0 0
    %1065 = vmatpush1.bf16.msra.mxu0 0
    %1066 = vmatprep.subr.bf16.mxu0 0
    %1067 = vmatpush1.bf16.msra.mxu0 0
    %1068 = vmatprep.subr.bf16.mxu0 0
    %1069 = vmatpush1.bf16.msra.mxu0 0
    %1070 = vmatprep.subr.bf16.mxu0 0
    %1071 = vmatpush1.bf16.msra.mxu0 0
    %1072 = vmatprep.subr.bf16.mxu0 0
    %1073 = vmatpush1.bf16.msra.mxu0 0
    %1074 = vmatprep.subr.bf16.mxu0 0
    %1075 = vmatpush1.bf16.msra.mxu0 0
    %1076 = vmatprep.subr.bf16.mxu0 0
    %1077 = vmatpush1.bf16.msra.mxu0 0
    %1078 = vmatprep.subr.bf16.mxu0 0
    %1079 = vmatpush1.bf16.msra.mxu0 0
    %1080 = vmatprep.mubr.bf16.mxu0 0
    %1081 = vmatmul.mubr.bf16.gmra.mrb[0].mxu0 %v969
    %v1082 = vpop.f32.mrb[0].mxu0
    %v1083 = vadd.f32 %v998, %v1082
    %v1084 = vpop.f32.mrb[0].mxu0
    %v1085 = vpop.f32.mrb[0].mxu0
    %v1086 = vadd.f32 %v998, %v1085
    %v1087 = vpop.f32.mrb[0].mxu0
    %1088 = vmatprep.mubr.bf16.mxu0 0
    %1089 = vmatmul.mubr.bf16.gmra.mrb[0].mxu0 %v970
    %v1090 = vpop.f32.mrb[0].mxu0
    %v1091 = vadd.f32 %v998, %v1090
    %v1092 = vpop.f32.mrb[0].mxu0
    %v1093 = vpop.f32.mrb[0].mxu0
    %v1094 = vadd.f32 %v998, %v1093
    %v1095 = vpop.f32.mrb[0].mxu0
    %1096 = vmatprep.mubr.bf16.mxu0 0
    %1097 = vmatmul.mubr.bf16.gmra.mrb[0].mxu0 %v971
    %v1098 = vpop.f32.mrb[0].mxu0
    %v1099 = vadd.f32 %v998, %v1098
    %v1100 = vpop.f32.mrb[0].mxu0
    %v1101 = vpop.f32.mrb[0].mxu0
    %v1102 = vadd.f32 %v998, %v1101
    %v1103 = vpop.f32.mrb[0].mxu0
    %1104 = vmatprep.mubr.bf16.mxu0 0
    %1105 = vmatmul.mubr.bf16.gmra.mrb[0].mxu0 %v972
    %v1106 = vpop.f32.mrb[0].mxu0
    %v1107 = vadd.f32 %v998, %v1106
    %v1108 = vpop.f32.mrb[0].mxu0
    %v1109 = vpop.f32.mrb[0].mxu0
    %v1110 = vadd.f32 %v998, %v1109
    %v1111 = vpop.f32.mrb[0].mxu0
    %1112 = vmatprep.mubr.bf16.mxu0 0
    %1113 = vmatmul.mubr.bf16.gmra.mrb[0].mxu0 %v973
    %v1114 = vpop.f32.mrb[0].mxu0
    %v1115 = vadd.f32 %v998, %v1114
    %v1116 = vpop.f32.mrb[0].mxu0
    %v1117 = vpop.f32.mrb[0].mxu0
    %v1118 = vadd.f32 %v998, %v1117
    %v1119 = vpop.f32.mrb[0].mxu0
    %1120 = vmatprep.mubr.bf16.mxu0 0
    %1121 = vmatmul.mubr.bf16.gmra.mrb[0].mxu0 %v974
    %v1122 = vpop.f32.mrb[0].mxu0
    %v1123 = vadd.f32 %v998, %v1122
    %v1124 = vpop.f32.mrb[0].mxu0
    %v1125 = vpop.f32.mrb[0].mxu0
    %v1126 = vadd.f32 %v998, %v1125
    %v1127 = vpop.f32.mrb[0].mxu0
    %1128 = vmatprep.mubr.bf16.mxu0 0
    %1129 = vmatmul.mubr.bf16.gmra.mrb[0].mxu0 %v975
    %v1130 = vpop.f32.mrb[0].mxu0
    %v1131 = vadd.f32 %v998, %v1130
    %v1132 = vpop.f32.mrb[0].mxu0
    %v1133 = vpop.f32.mrb[0].mxu0
    %v1134 = vadd.f32 %v998, %v1133
    %v1135 = vpop.f32.mrb[0].mxu0
    %1136 = vmatprep.mubr.bf16.mxu0 0
    %1137 = vmatmul.mubr.bf16.gmra.mrb[0].mxu0 %v976
    %v1138 = vpop.f32.mrb[0].mxu0
    %v1139 = vadd.f32 %v998, %v1138
    %v1140 = vpop.f32.mrb[0].mxu0
    %v1141 = vpop.f32.mrb[0].mxu0
    %v1142 = vadd.f32 %v998, %v1141
    %v1143 = vpop.f32.mrb[0].mxu0
    %1144 = vdwg.mxu0
    %v1145 = vmax.f32 %v1083, 0.0
    %v1146 = vmax.f32 %v1086, 0.0
    %v1147 = vmax.f32 %v1091, 0.0
    %v1148 = vmax.f32 %v1094, 0.0
    %v1149 = vmax.f32 %v1099, 0.0
    %v1150 = vmax.f32 %v1102, 0.0
    %v1151 = vmax.f32 %v1107, 0.0
    %v1152 = vmax.f32 %v1110, 0.0
    %v1153 = vmax.f32 %v1115, 0.0
    %v1154 = vmax.f32 %v1118, 0.0
    %v1155 = vmax.f32 %v1123, 0.0
    %v1156 = vmax.f32 %v1126, 0.0
    %v1157 = vmax.f32 %v1131, 0.0
    %v1158 = vmax.f32 %v1134, 0.0
    %v1159 = vmax.f32 %v1139, 0.0
    %v1160 = vmax.f32 %v1142, 0.0
    %1161 = vxpose.xlu0.b32.start [1/16] %v1145, 128
    %1162 = vxpose.xlu0.b32.cont [2/16] %v1146, 128
    %1163 = vxpose.xlu0.b32.cont [3/16] %v1147, 128
    %1164 = vxpose.xlu0.b32.cont [4/16] %v1148, 128
    %1165 = vxpose.xlu0.b32.cont [5/16] %v1149, 128
    %1166 = vxpose.xlu0.b32.cont [6/16] %v1150, 128
    %1167 = vxpose.xlu0.b32.cont [7/16] %v1151, 128
    %1168 = vxpose.xlu0.b32.cont [8/16] %v1152, 128
    %1169 = vxpose.xlu0.b32.cont [9/16] %v1153, 128
    %1170 = vxpose.xlu0.b32.cont [10/16] %v1154, 128
    %1171 = vxpose.xlu0.b32.cont [11/16] %v1155, 128
    %1172 = vxpose.xlu0.b32.cont [12/16] %v1156, 128
    %1173 = vxpose.xlu0.b32.cont [13/16] %v1157, 128
    %1174 = vxpose.xlu0.b32.cont [14/16] %v1158, 128
    %1175 = vxpose.xlu0.b32.cont [15/16] %v1159, 128
    %1176 = vxpose.xlu0.b32.end [16/16] %v1160, 128
    %v1177 = vpop.trf.xlu0
    %v1178 = vpop.trf.xlu0
    %v1179 = vpop.trf.xlu0
    %v1180 = vpop.trf.xlu0
    %v1181 = vpop.trf.xlu0
    %v1182 = vpop.trf.xlu0
    %v1183 = vpop.trf.xlu0
    %v1184 = vpop.trf.xlu0
    %v1185 = vpop.trf.xlu0
    %v1186 = vpop.trf.xlu0
    %v1187 = vpop.trf.xlu0
    %v1188 = vpop.trf.xlu0
    %v1189 = vpop.trf.xlu0
    %v1190 = vpop.trf.xlu0
    %v1191 = vpop.trf.xlu0
    %v1192 = vpop.trf.xlu0
    %v1193 = vpack.c.bf16 %v1178, %v1177
    %v1194 = vpack.c.bf16 %v1180, %v1179
    %v1195 = vld [vmem:[%s9] sm:$0x1]
    %v1196 = vld [vmem:[#allocation2] sm:$0x1]
    %1198 = vset.pattern.permute.xlu0 0
    %1199 = vperm.xlu0 %1198, %v1196
    %v1200 = vpop.permute.xlu0 %1199
    %v1202 = vlaneseq
    %v1203 = vshrl.u32 %v1202, 7
    %v1204 = vsub.s32 0, %v1203
    %v1205 = vrot.slane %v1200, %v1204
    %vm1206 = vcmask 261120
    %v1208 = vsel %vm1206, %v1195, 0
    %1210 = vmatprep.subr.bf16.mxu0 0
    %1211 = vmatpush1.bf16.msra.mxu0 %v1193
    %1212 = vmatprep.subr.bf16.mxu0 0
    %1213 = vmatpush1.bf16.msra.mxu0 %v1194
    %1214 = vmatprep.subr.bf16.mxu0 0
    %1215 = vmatpush1.bf16.msra.mxu0 0
    %1216 = vmatprep.subr.bf16.mxu0 0
    %1217 = vmatpush1.bf16.msra.mxu0 0
    %1218 = vmatprep.subr.bf16.mxu0 0
    %1219 = vmatpush1.bf16.msra.mxu0 0
    %1220 = vmatprep.subr.bf16.mxu0 0
    %1221 = vmatpush1.bf16.msra.mxu0 0
    %1222 = vmatprep.subr.bf16.mxu0 0
    %1223 = vmatpush1.bf16.msra.mxu0 0
    %1224 = vmatprep.subr.bf16.mxu0 0
    %1225 = vmatpush1.bf16.msra.mxu0 0
    %1226 = vmatprep.subr.bf16.mxu0 0
    %1227 = vmatpush1.bf16.msra.mxu0 0
    %1228 = vmatprep.subr.bf16.mxu0 0
    %1229 = vmatpush1.bf16.msra.mxu0 0
    %1230 = vmatprep.subr.bf16.mxu0 0
    %1231 = vmatpush1.bf16.msra.mxu0 0
    %1232 = vmatprep.subr.bf16.mxu0 0
    %1233 = vmatpush1.bf16.msra.mxu0 0
    %1234 = vmatprep.subr.bf16.mxu0 0
    %1235 = vmatpush1.bf16.msra.mxu0 0
    %1236 = vmatprep.subr.bf16.mxu0 0
    %1237 = vmatpush1.bf16.msra.mxu0 0
    %1238 = vmatprep.subr.bf16.mxu0 0
    %1239 = vmatpush1.bf16.msra.mxu0 0
    %1240 = vmatprep.subr.bf16.mxu0 0
    %1241 = vmatpush1.bf16.msra.mxu0 0
    %1242 = vmatprep.mubr.bf16.mxu0 0
    %1243 = vmatmul.mubr.bf16.gmra.mrb[0].mxu0 %v1208
    %v1244 = vpop.f32.mrb[0].mxu0
    %v1245 = vadd.f32 %v1205, %v1244
    %v1246 = vpop.f32.mrb[0].mxu0
    %v1247 = vpop.f32.mrb[0].mxu0
    %v1248 = vpop.f32.mrb[0].mxu0
    %1249 = vdwg.mxu0
    %1250 = vst [vmem:[%s11] sm:$0x1] %v1245
    // Predicated region
    $region54: #{value_forward.1} parent=1 // pred_check
      _
    $region55: #{value_forward.1} parent=1 // pred_check_branch
      %1252 = sbr.rel (0) target = $region57
    $region56: #{value_forward.1} parent=1 // pred_region
      _
    $region57: #{value_forward.1} parent=1 // pred_fallthru
      _
    // Predicated region
    $region58: #{value_forward.1} parent=1 // pred_check
      _
    $region59: #{value_forward.1} parent=1 // pred_check_branch
      %1254 = sbr.rel (0) target = $region61
    $region60: #{value_forward.1} parent=1 // pred_region
      _
    $region61: #{value_forward.1} parent=1 // pred_fallthru
      _
    %1255 = vsyncpa [#allocation4], 1
    %1256 = vsyncpa [#allocation6], 1

</llo_original>
